<compile_context>
chip_gen: v6e
topology: v6e:2x2x1
jax: 0.10.0
libtpu: 0.0.40
codegen_flags: <defaults>
</compile_context>

<pallas_src>
import functools

import jax
import jax.numpy as jnp
from jax.experimental import pallas as pl
from jax.experimental.pallas import tpu as pltpu

_LANE = 128
_MIB = 1024 * 1024


def _sublane_multiple(dtype):
    itemsize = jnp.dtype(dtype).itemsize
    return max(8, 32 // max(1, itemsize))   # 8 for f32, 16 for bf16, 32 for int8


def _choose_block_rows(n_rows, bytes_per_row, sub, budget_bytes):
    """Row-block size: ~budget_bytes of buffers per step, sublane-legal."""
    if n_rows <= sub:
        return int(n_rows)                   # block == full dim, always legal
    bm = budget_bytes // max(1, bytes_per_row)
    bm = min(bm, n_rows)
    bm = max(sub, (bm // sub) * sub)         # second-to-last block dim % sub == 0
    return int(bm)


def _frame_kernel(x_ref, o_ref, *, pad_type):
    # grid = (row_blocks, T).  x_ref/o_ref: (bm, D).  One frame per step,
    # always a full-lane-width store starting at lane 0.
    if pad_type == "repeat":
        o_ref[...] = x_ref[...]
    else:  # "zero"
        t = pl.program_id(1)

        @pl.when(t == 0)
        def _():
            o_ref[...] = x_ref[...]

        @pl.when(t > 0)
        def _():
            o_ref[...] = jnp.zeros_like(o_ref)


def _slab_kernel(x_ref, o_ref, *, ntimes, pad_type):
    # grid = (row_blocks,).  x_ref: (bm, D); o_ref: (bm, ntimes*D).
    bm, d = x_ref.shape
    x = x_ref[...]
    if pad_type == "repeat":
        for t in range(ntimes):
            o_ref[:, t * d:(t + 1) * d] = x
    else:  # "zero"
        o_ref[:, 0:d] = x
        if ntimes > 1:
            o_ref[:, d:] = jnp.zeros((bm, (ntimes - 1) * d), dtype=o_ref.dtype)


def pad_im2video(x, *, ntimes, pad_type, time_dim=2):
    """JAX/Pallas equivalent of PadIm2Video.forward."""
    assert ntimes > 0
    assert pad_type in ("zero", "repeat")
    assert time_dim == 2, "kernel specialized for the module default time_dim=2"

    if x.ndim == 5:
        if x.shape[time_dim] != 1:
            return x                            # module pass-through
        x = jnp.squeeze(x, axis=time_dim)       # reduce to the 4-D case
    elif x.ndim != 4:
        raise ValueError(f"Dimension incorrect {x.shape}")

    N, C, H, W = x.shape
    T = int(ntimes)
    M = N * C
    D = H * W
    itemsize = jnp.dtype(x.dtype).itemsize
    sub = _sublane_multiple(x.dtype)

    x_flat = x.reshape(M, D)                    # lane dim = H*W (dense)
    out_shape = jax.ShapeDtypeStruct((M, T * D), x.dtype)
    cost = pl.CostEstimate(
        flops=0, transcendentals=0,
        bytes_accessed=int((1 + T) * M * D * itemsize))

    budget = 24 * _MIB                          # total double-buffered block budget

    if D % _LANE == 0:
        # Lane-aligned main path: t is a grid axis; every store is a
        # full-width (bm, D) slab at lane 0; VMEM bounded by bm*D regardless
        # of ntimes; >= T grid steps for megacore sharding / pipelining.
        bytes_per_row = 2 * (D + D) * itemsize          # 2 in bufs + 2 out bufs
        bm = _choose_block_rows(M, bytes_per_row, sub, budget)
        grid = (pl.cdiv(M, bm), T)
        in_specs = [pl.BlockSpec((bm, D), lambda i, t: (i, 0))]   # resident over t
        out_specs = pl.BlockSpec((bm, D), lambda i, t: (i, t))
        kernel = functools.partial(_frame_kernel, pad_type=pad_type)
        semantics = ("parallel", "parallel")
        block_bytes = 2 * (bm * D + bm * D) * itemsize
    else:
        # Fallback (H*W not a multiple of 128, e.g. 14x14/7x7 maps): fold T
        # into the block; per-frame stores are lane-shifted (masked) but the
        # data volume is small in this regime.
        bytes_per_row = 2 * (1 + T) * D * itemsize
        bm = _choose_block_rows(M, bytes_per_row, sub, budget)
        grid = (pl.cdiv(M, bm),)
        in_specs = [pl.BlockSpec((bm, D), lambda i: (i, 0))]
        out_specs = pl.BlockSpec((bm, T * D), lambda i: (i, 0))
        kernel = functools.partial(_slab_kernel, ntimes=T, pad_type=pad_type)
        semantics = ("parallel",)
        block_bytes = 2 * (bm * D + bm * T * D) * itemsize

    # TODO(synk): if H*W is not a multiple of 128 AND ntimes*H*W is very large,
    # the fallback's minimum block can exceed v7x's 64 MiB physical VMEM; a
    # padded-lane variant would be needed (not seen for real vision shapes).
    vmem_limit = int(max(32 * _MIB, min(block_bytes * 5 // 4, 128 * _MIB)))

    out_flat = pl.pallas_call(
        kernel,
        out_shape=out_shape,
        grid_spec=pltpu.PrefetchScalarGridSpec(
            num_scalar_prefetch=0,
            grid=grid,
            in_specs=in_specs,
            out_specs=out_specs,
        ),
        compiler_params=pltpu.CompilerParams(
            dimension_semantics=semantics,
            vmem_limit_bytes=vmem_limit,
        ),
        cost_estimate=cost,
    )(x_flat)

    # (N*C, T*H*W) -> (N, C, T, H, W): contiguous, metadata-only reshape.
    return out_flat.reshape(N, C, T, H, W)


def _reference(x, *, ntimes, pad_type):
    x5 = x[:, :, None, :, :]                    # unsqueeze at time_dim=2
    if pad_type == "repeat":
        return jnp.tile(x5, (1, 1, ntimes, 1, 1))
    return jnp.pad(x5, ((0, 0), (0, 0), (0, ntimes - 1), (0, 0), (0, 0)))


def _check(x, ntimes, pad_type):
    out = jax.block_until_ready(pad_im2video(x, ntimes=ntimes, pad_type=pad_type))
    ref = _reference(x, ntimes=ntimes, pad_type=pad_type)
    assert out.shape == ref.shape, (out.shape, ref.shape)
    assert out.dtype == x.dtype
    assert bool(jnp.allclose(out.astype(jnp.float32), ref.astype(jnp.float32))), \
        f"mismatch for pad_type={pad_type}, shape={x.shape}, dtype={x.dtype}"


if __name__ == "__main__":
    key = jax.random.PRNGKey(0)
    ntimes = 2

    # Main case: aligned path (H*W = 256, multiple of 128).
    x = jax.random.normal(key, (2, 4, 16, 16), dtype=jnp.float32)
    for pad_type in ("repeat", "zero"):
        _check(x, ntimes, pad_type)

    # Ragged row count (M = 10, not a multiple of the 8-row block).
    x_rag = jax.random.normal(key, (2, 5, 16, 16), dtype=jnp.float32)
    for pad_type in ("repeat", "zero"):
        _check(x_rag, ntimes, pad_type)

    # Unaligned lane dim (H*W = 196): exercises the fallback slab path.
    x_un = jax.random.normal(key, (2, 4, 14, 14), dtype=jnp.float32)
    for pad_type in ("repeat", "zero"):
        _check(x_un, ntimes, pad_type)

    # bf16 input (dtype-aware sublane rounding).
    x_bf = jax.random.normal(key, (2, 4, 16, 16), dtype=jnp.bfloat16)
    _check(x_bf, ntimes, "repeat")

    # 5-D input with T != 1 passes through unchanged (module behavior).
    x5 = jax.random.normal(key, (2, 4, 3, 16, 16), dtype=jnp.float32)
    out5 = jax.block_until_ready(pad_im2video(x5, ntimes=ntimes, pad_type="repeat"))
    assert bool(jnp.array_equal(out5, x5))

    print("KERNEL_OK")
</pallas_src>

<mosaic_0001>
module attributes {stable_mosaic.version = 11 : i64} {
  func.func @_frame_kernel(%arg0: i32, %arg1: i32, %arg2: memref<8x256xf32, #tpu.memory_space<vmem>>, %arg3: memref<8x256xf32, #tpu.memory_space<vmem>>) attributes {dimension_semantics = [#tpu.dimension_semantics<parallel>, #tpu.dimension_semantics<parallel>], iteration_bounds = array<i64: 1, 2>, scalar_prefetch = 0 : i64, scratch_operands = 0 : i64, tpu.core_type = #tpu.core_type<tc>, window_params = [{transform_indices = @transform_0, window_bounds = array<i64: 8, 256>}, {transform_indices = @transform_1, window_bounds = array<i64: 8, 256>}]} {
    %c0 = arith.constant 0 : index
    %c0_0 = arith.constant 0 : index
    %0 = vector.load %arg2[%c0, %c0_0] : memref<8x256xf32, #tpu.memory_space<vmem>>, vector<8x256xf32>
    %c0_1 = arith.constant 0 : index
    %c0_2 = arith.constant 0 : index
    %1 = vector.load %arg3[%c0_1, %c0_2] : memref<8x256xf32, #tpu.memory_space<vmem>>, vector<8x256xf32>
    tpu.vector_store %arg3[%c0_1, %c0_2], %0 {strides = array<i32>} : memref<8x256xf32, #tpu.memory_space<vmem>>, vector<8x256xf32>,
    return
  }
  func.func @transform_0(%arg0: i32, %arg1: i32) -> (i32, i32) {
    %c0_i32 = arith.constant 0 : i32
    %c0_i32_0 = arith.constant 0 : i32
    return %arg0, %c0_i32 : i32, i32
  }
  func.func @transform_1(%arg0: i32, %arg1: i32) -> (i32, i32) {
    %c0_i32 = arith.constant 0 : i32
    return %arg0, %arg1 : i32, i32
  }
}

</mosaic_0001>

<llo_original>
// kernel: tpu_custom_call.1
$region0: #{tpu_custom_call.1}
  #allocation0 [shape = 'u32[]', space=smem, size = 0x4, offset = 0x4, fixed_abs, tag = 'smem constant byte address 0x4 - core index']
  #allocation1 [shape = 'u32[144,128]{1,0:T(1,128)}', space=vmem, size = 0x12000, scoped, tag = 'internal scratch']
  %s0 = inlined_call_operand.hbm [shape: f32[8,256], index: 0, kind: input, shape index: {}]
  %s1 = inlined_call_operand.hbm [shape: f32[8,512], index: 1, kind: output, shape index: {}]
  %s2 = sld [smem:[#allocation0]]
  $region41: #{tpu_custom_call.1} parent=0
    _
  %s4 = ssub.s32 1, %s2
  %s5 = scalar_select 0, %s4, %s2
  $region1: #{tpu_custom_call.1} parent=0
    #allocation2 [shape = 'u8[8192]{0}', space=vmem, size = 0x2000, scoped, tag = 'input window, operand 0, single buffered']
    #allocation3 [shape = 's32[2]{0}', space=sflag, size = 0x8, scoped, tag = 'scoped memory for tpu_custom_call.1']
    #allocation4 [shape = 's32[2]{0}', space=sflag, size = 0x8, scoped, tag = 'scoped memory for tpu_custom_call.1']
    #allocation5 [shape = 'u8[16384]{0}', space=vmem, size = 0x4000, scoped, tag = 'output window, operand 0']
    %6 = vsyncpa [#allocation3], 0
    %7 = vsyncpa [#allocation4], 0
    %s8 = scalar_lea.sflag [#allocation4], 1
    %9 = vsyncpa %s8, 0
    loop: start=0, step=1, limit=4
    $region2: #{tpu_custom_call.1} parent=1 // loop_pre_header
      _
    $region3: #{tpu_custom_call.1} parent=1 // loop_header
      %s11 = sphi 0, %s15
      %p12 = scmp.ge.s32.totalorder %s11, 4
      %s18 = sphi 0, %s30
      %s19 = sphi 0, %s26
      %s20 = sphi 0, %s18
      %s21 = sphi 0, %s19
      %s22 = sphi 0, %s20
      %s23 = sphi 0, %s21
      %s33 = sphi 0, %s35
      %s36 = sphi 0, %s33
      %s37 = sphi 0, %s36
      %s53 = sphi 0, %s37
      %s61 = sphi 0, %s63
      %s64 = sphi 0, %s61
      %s65 = sphi 0, %s64
      %s81 = sphi 0, %s65
    $region4: #{tpu_custom_call.1} parent=1 // loop_header_branch
      %14 = sbr.rel (%p12) target = $region8
    $region5: #{tpu_custom_call.1} parent=1 // loop_body
      %s16 = ssub.s32 %s11, 1
      %s17 = ssub.s32 %s11, 2
      %s24 = sadd.s32 1, %s19
      %p25 = scmp.ge.s32.totalorder %s24, 2
      %s26 = scalar_select %p25, 0, %s24
      %s27 = sadd.s32 1, %s18
      %s28 = scalar_select %p25, %s27, %s18
      %p29 = scmp.ge.s32.totalorder %s28, 1
      %s30 = scalar_select %p29, 0, %s28
      %s31 = ssub.s32 %s18, %s30
      %p32 = scmp.eq.s32.totalorder %s31, 0
      %s34 = sadd.s32 %s33, 1
      %s35 = scalar_select %p32, %s33, %s34
      %p38 = pneg %p32
      %p39 = scmp.eq.s32.totalorder %s11, 1
      %p40 = por %p38, %p39
      %p41 = scmp.ne.s32.totalorder %s33, %s36
      %p42 = scmp.eq.s32.totalorder %s11, 0
      %p43 = por %p41, %p42
      %p44 = scmp.ne.s32.totalorder %s33, %s36
      %p45 = scmp.eq.s32.totalorder %s16, 1
      %p46 = por %p44, %p45
      %p47 = scmp.ne.s32.totalorder %s36, %s37
      %p48 = scmp.eq.s32.totalorder %s16, 0
      %p49 = por %p47, %p48
      %p50 = scmp.ne.s32.totalorder %s36, %s37
      %p51 = scmp.eq.s32.totalorder %s17, 1
      %p52 = por %p50, %p51
      %p54 = scmp.ne.s32.totalorder %s37, %s53
      %p55 = scmp.eq.s32.totalorder %s17, 0
      %p56 = por %p54, %p55
      %s57 = ssub.s32 %s18, %s30
      %s58 = ssub.s32 %s19, %s26
      %s59 = sor.u32 %s57, %s58
      %p60 = scmp.eq.s32.totalorder %s59, 0
      %s62 = sadd.s32 %s61, 1
      %s63 = scalar_select %p60, %s61, %s62
      %p66 = pneg %p60
      %p67 = scmp.eq.s32.totalorder %s11, 1
      %p68 = por %p66, %p67
      %p69 = scmp.ne.s32.totalorder %s61, %s64
      %p70 = scmp.eq.s32.totalorder %s11, 0
      %p71 = por %p69, %p70
      %p72 = scmp.ne.s32.totalorder %s61, %s64
      %p73 = scmp.eq.s32.totalorder %s16, 1
      %p74 = por %p72, %p73
      %p75 = scmp.ne.s32.totalorder %s64, %s65
      %p76 = scmp.eq.s32.totalorder %s16, 0
      %p77 = por %p75, %p76
      %p78 = scmp.ne.s32.totalorder %s64, %s65
      %p79 = scmp.eq.s32.totalorder %s17, 1
      %p80 = por %p78, %p79
      %p82 = scmp.ne.s32.totalorder %s65, %s81
      %p83 = scmp.eq.s32.totalorder %s17, 0
      %p84 = por %p82, %p83
      %p85 = scmp.le.s32.totalorder 1, %s11
      %p86 = scmp.lt.s32.totalorder %s11, 3
      %p87 = pnand %p85, %p86
      %p88 = pneg %p87
      // Predicated region
      $region9: #{tpu_custom_call.1} parent=5 // pred_check
        _
      $region10: #{tpu_custom_call.1} parent=5 // pred_check_branch
        %90 = sbr.rel (%p87) target = $region12
      $region11: #{tpu_custom_call.1} parent=5 // pred_region
        %s91 = ssub.s32 %s11, 1
        // Predicated region
        $region13: #{tpu_custom_call.1} parent=11 // pred_check
          %p92 = pneg %p49
        $region14: #{tpu_custom_call.1} parent=11 // pred_check_branch
          %94 = sbr.rel (%p92) target = $region16
        $region15: #{tpu_custom_call.1} parent=11 // pred_region
          %s96 = ssub.s32 256, 256
          %97 = vsyncadd [#allocation3], %s96
          %s98 = smul.addr %s20, 2
          %s99 = smul.addr %s98, 128
          %s100 = scalar_lea.hbm %s0, %s99
          %s102 = sshll.u32 [#allocation2], 4
          %s103 = int_to_ptr.vmem [resolvable:$true] %s102
          %105 = dma.hbm_to_vmem [thread:$0]  %s100, 256, %s103, [#allocation3]
        $region16: #{tpu_custom_call.1} parent=11 // pred_fallthru
          _
      $region12: #{tpu_custom_call.1} parent=5 // pred_fallthru
        _
      %p106 = scmp.lt.s32.totalorder %s11, 2
      // Predicated region
      $region17: #{tpu_custom_call.1} parent=5 // pred_check
        %p107 = pneg %p106
      $region18: #{tpu_custom_call.1} parent=5 // pred_check_branch
        %109 = sbr.rel (%p107) target = $region20
      $region19: #{tpu_custom_call.1} parent=5 // pred_region
        _
      $region20: #{tpu_custom_call.1} parent=5 // pred_fallthru
        _
      %p110 = scmp.le.s32.totalorder 1, %s11
      %p111 = scmp.lt.s32.totalorder %s11, 3
      %p112 = pnand %p110, %p111
      %p113 = pneg %p112
      // Predicated region
      $region21: #{tpu_custom_call.1} parent=5 // pred_check
        _
      $region22: #{tpu_custom_call.1} parent=5 // pred_check_branch
        %115 = sbr.rel (%p112) target = $region24
      $region23: #{tpu_custom_call.1} parent=5 // pred_region
        %s116 = ssub.s32 %s11, 1
        // Predicated region
        $region25: #{tpu_custom_call.1} parent=23 // pred_check
          %p117 = pneg %p49
        $region26: #{tpu_custom_call.1} parent=23 // pred_check_branch
          %119 = sbr.rel (%p117) target = $region28
        $region27: #{tpu_custom_call.1} parent=23 // pred_region
          %120 = dma.done [#allocation3], 256
        $region28: #{tpu_custom_call.1} parent=23 // pred_fallthru
          _
        %p121 = pneg %p49
        %p122 = pneg %p46
        %p123 = pneg %p77
        %p124 = pneg %p74
        %s125 = sand.u32 %s64, 1
        %s126 = scalar_lea.sflag [#allocation4], %s125
        %s127 = sand.u32 %s64, 1
        %s128 = smul.addr %s127, 16
        %s129 = scalar_lea.vmem [#allocation5], %s128
        %s130 = smul.u32 2, %s21
        %v131 = vld [vmem:[#allocation2] sm:$0xff]
        %v132 = vld [vmem:[#allocation2 + $0x8] sm:$0xff]
        %133 = vst [vmem:[%s129] sm:$0xff] %v131
        %134 = vst [vmem:[%s129 + $0x8] sm:$0xff] %v132
        %s135 = sand.u32 %s64, 1
        %s136 = scalar_lea.sflag [#allocation4], %s135
        %s137 = sand.u32 %s64, 1
        %s138 = smul.addr %s137, 16
        %s139 = scalar_lea.vmem [#allocation5], %s138
        // Predicated region
        $region29: #{tpu_custom_call.1} parent=23 // pred_check
          %p140 = pneg %p74
        $region30: #{tpu_custom_call.1} parent=23 // pred_check_branch
          %142 = sbr.rel (%p140) target = $region32
        $region31: #{tpu_custom_call.1} parent=23 // pred_region
          %s143 = smul.u32 2, %s21
          %s145 = ssub.s32 256, 256
          %146 = vsyncadd %s136, %s145
          %s147 = smul.addr %s20, 4
          %s148 = sadd.s32 %s143, %s147
          %s149 = smul.addr %s148, 128
          %s150 = scalar_lea.hbm %s1, %s149
          %s152 = sshll.u32 %s139, 4
          %s153 = int_to_ptr.vmem [resolvable:$true] %s152
          %155 = dma.vmem_to_hbm [thread:$0]  %s153, 256, %s150, %s136
        $region32: #{tpu_custom_call.1} parent=23 // pred_fallthru
          _
      $region24: #{tpu_custom_call.1} parent=5 // pred_fallthru
        _
      %p156 = scmp.le.s32.totalorder 2, %s11
      // Predicated region
      $region33: #{tpu_custom_call.1} parent=5 // pred_check
        %p157 = pneg %p156
      $region34: #{tpu_custom_call.1} parent=5 // pred_check_branch
        %159 = sbr.rel (%p157) target = $region36
      $region35: #{tpu_custom_call.1} parent=5 // pred_region
        %s160 = ssub.s32 %s11, 2
        // Predicated region
        $region37: #{tpu_custom_call.1} parent=35 // pred_check
          %p161 = pneg %p80
        $region38: #{tpu_custom_call.1} parent=35 // pred_check_branch
          %163 = sbr.rel (%p161) target = $region40
        $region39: #{tpu_custom_call.1} parent=35 // pred_region
          %s164 = sand.u32 %s65, 1
          %s165 = scalar_lea.sflag [#allocation4], %s164
          %s166 = sand.u32 %s65, 1
          %s167 = smul.addr %s166, 16
          %s168 = scalar_lea.vmem [#allocation5], %s167
          %169 = dma.done %s165, 256
        $region40: #{tpu_custom_call.1} parent=35 // pred_fallthru
          _
      $region36: #{tpu_custom_call.1} parent=5 // pred_fallthru
        _
    $region6: #{tpu_custom_call.1} parent=1 // loop_footer
      %s15 = sadd.s32 1, %s11
    $region7: #{tpu_custom_call.1} parent=1 // loop_footer_branch
      %10 = sbr.rel target = $region3
    $region8: #{tpu_custom_call.1} parent=1 // loop_exit
      _
    %170 = vsyncpa [#allocation3], 1
    %s171 = scalar_lea.sflag [#allocation3], 1
    %172 = vsyncpa %s171, 1
    %173 = vsyncpa [#allocation4], 1
    %s174 = scalar_lea.sflag [#allocation4], 1
    %175 = vsyncpa %s174, 1

</llo_original>
